<compile_context>
chip_gen: v6e
topology: v6e:2x2x1
jax: 0.10.0
libtpu: 0.0.40
codegen_flags: <defaults>
</compile_context>

<pallas_src>
import jax
import jax.numpy as jnp
from jax import lax
from jax.experimental import pallas as pl
from jax.experimental.pallas import tpu as pltpu


def _round_up(x, m):
    return (x + m - 1) // m * m


def _vmem_limit_bytes():
    """Generation-aware scoped-VMEM budget (v5e/v6e: 128 MiB, v7x: 64 MiB)."""
    try:
        cap = pltpu.get_tpu_info().vmem_capacity_bytes
    except Exception:
        cap = 128 * 1024 * 1024
    return int(min(cap // 2, 96 * 1024 * 1024))


def _clamp_time_block(t_req, *, b_pad, d_in, hp, n_out, mm_bytes, vmem_limit):
    """Cap timesteps/block so double-buffered x/out blocks + f32 gi and h-slab
    scratch stay within ~half the scoped VMEM budget."""
    per_step = b_pad * (2 * d_in * mm_bytes      # x block (double buffered)
                        + 2 * n_out * 4          # output block (double buffered)
                        + 3 * hp * 4             # gi scratch (f32)
                        + hp * 4)                # h slab scratch (f32)
    max_t = max(1, (vmem_limit // 2) // max(1, per_step))
    return max(1, min(t_req, max_t))


# ----------------------------- Pallas kernels ------------------------------

def _matmul_bias_kernel(x_ref, w_ref, b_ref, o_ref):
    o_ref[...] = (jnp.dot(x_ref[...].astype(w_ref.dtype), w_ref[...],
                          preferred_element_type=jnp.float32)
                  + b_ref[...]).astype(o_ref.dtype)


def pallas_matmul_bias(x, w, b, *, tile_m=1024, out_dtype=jnp.float32,
                       vmem_limit=None):
    """x:(M,K) @ w:(K,N) + b:(N,) -> (M,N); tiled over M ("parallel")."""
    if vmem_limit is None:
        vmem_limit = _vmem_limit_bytes()
    M, K = x.shape
    N = w.shape[1]
    # Sublane alignment: 8 rows for f32 tiles, 16 when any operand is 16-bit.
    align = 16 if (jnp.dtype(out_dtype).itemsize < 4
                   or jnp.dtype(x.dtype).itemsize < 4
                   or jnp.dtype(w.dtype).itemsize < 4) else 8
    # Clamp requested tile so double-buffered x/out blocks fit the budget.
    bytes_per_row = 2 * (K * jnp.dtype(x.dtype).itemsize
                         + N * jnp.dtype(out_dtype).itemsize)
    tile_m = max(align, min(tile_m, (vmem_limit // 2) // max(1, bytes_per_row)))
    # Bounded M padding: < align rows per tile (no ~2x round_up(M, tile) waste).
    M_al = _round_up(max(M, align), align)
    n_tiles = pl.cdiv(M_al, tile_m)
    tm = _round_up(pl.cdiv(M_al, n_tiles), align)
    Mp = tm * n_tiles
    if Mp != M:
        x = jnp.pad(x, ((0, Mp - M), (0, 0)))
    out = pl.pallas_call(
        _matmul_bias_kernel,
        out_shape=jax.ShapeDtypeStruct((Mp, N), out_dtype),
        grid=(n_tiles,),
        in_specs=[pl.BlockSpec((tm, K), lambda i: (i, 0)),
                  pl.BlockSpec((K, N), lambda i: (0, 0)),
                  pl.BlockSpec((1, N), lambda i: (0, 0))],
        out_specs=pl.BlockSpec((tm, N), lambda i: (i, 0)),
        compiler_params=pltpu.CompilerParams(
            dimension_semantics=("parallel",),
            vmem_limit_bytes=vmem_limit),
    )(x, w, b.reshape(1, N))
    return out[:M] if Mp != M else out


def _make_gru_kernel(*, t_blk, b_pad, fused_head):
    """GRU over one time block.  Rows are time-major (t*b_pad + b).

    Per block: one big input-projection matmul into VMEM scratch, then a
    sequential recurrence reading gi slices from VMEM; the linear head (if
    fused) runs once on the whole block of hidden states after the loop.
    """

    def kernel(*refs):
        if fused_head:
            (x_ref, wih_ref, bih_ref, whh_ref, bhh_ref,
             wout_ref, bout_ref, o_ref, h_ref, gi_ref, hs_ref) = refs
        else:
            (x_ref, wih_ref, bih_ref, whh_ref, bhh_ref,
             o_ref, h_ref, gi_ref) = refs
        Hp = h_ref.shape[1]
        mm_dtype = wih_ref.dtype

        @pl.when(pl.program_id(0) == 0)
        def _():
            h_ref[...] = jnp.zeros_like(h_ref)

        # Hoisted input projection for the whole block: (t_blk*b_pad, D)@(D, 3Hp).
        gi_ref[...] = (jnp.dot(x_ref[...].astype(mm_dtype), wih_ref[...],
                               preferred_element_type=jnp.float32)
                       + bih_ref[...])

        def step(t, carry):
            row = t * b_pad
            if not isinstance(t, int):
                row = pl.multiple_of(row, b_pad)
            h = h_ref[...]
            # TODO(synk): for tiny batches, keep W_hh resident in MXU weight
            # registers (matmul_push_rhs/acc_lhs/pop) instead of re-pushing it
            # every step; left as jnp.dot for lowering robustness.
            gh = (jnp.dot(h.astype(mm_dtype), whh_ref[...],
                          preferred_element_type=jnp.float32)
                  + bhh_ref[...])
            gi = gi_ref[pl.ds(row, b_pad), :]
            # PyTorch gate order (r, z, n); one sigmoid for r and z together.
            rz = jax.nn.sigmoid(gi[:, :2 * Hp] + gh[:, :2 * Hp])
            r = rz[:, :Hp]
            z = rz[:, Hp:]
            n = jnp.tanh(gi[:, 2 * Hp:] + r * gh[:, 2 * Hp:])
            h_new = (1.0 - z) * n + z * h
            h_ref[...] = h_new
            if fused_head:
                hs_ref[pl.ds(row, b_pad), :] = h_new
            else:
                o_ref[pl.ds(row, b_pad), :] = h_new.astype(o_ref.dtype)
            return carry

        if t_blk <= 8:
            for t in range(t_blk):           # short trip count: full unroll
                step(t, 0)
        else:
            lax.fori_loop(0, t_blk, step, 0, unroll=2)

        if fused_head:
            # Deferred linear head: one well-shaped matmul off the serial chain.
            o_ref[...] = (jnp.dot(hs_ref[...].astype(mm_dtype), wout_ref[...],
                                  preferred_element_type=jnp.float32)
                          + bout_ref[...]).astype(o_ref.dtype)

    return kernel


def pallas_gru_layer(x, w_ih, b_ih, w_hh, b_hh, *, t_blk, b_pad,
                     head_w=None, head_b=None, out_dtype=jnp.float32,
                     vmem_limit=None):
    """One GRU layer over time-major rows x:(Tp*b_pad, D).

    Returns (Tp*b_pad, Hp) hidden states, or (Tp*b_pad, NCp) logits when the
    linear head is fused into this (last) layer.
    """
    if vmem_limit is None:
        vmem_limit = _vmem_limit_bytes()
    MB, Din = x.shape
    Hp = w_hh.shape[0]
    G = w_hh.shape[1]                      # 3*Hp
    fused = head_w is not None
    n_out = head_w.shape[1] if fused else Hp
    rows_blk = t_blk * b_pad
    assert MB % rows_blk == 0, (MB, rows_blk)
    n_blocks = MB // rows_blk

    kernel = _make_gru_kernel(t_blk=t_blk, b_pad=b_pad, fused_head=fused)
    in_specs = [pl.BlockSpec((rows_blk, Din), lambda i: (i, 0)),
                pl.BlockSpec((Din, G), lambda i: (0, 0)),
                pl.BlockSpec((1, G), lambda i: (0, 0)),
                pl.BlockSpec((Hp, G), lambda i: (0, 0)),
                pl.BlockSpec((1, G), lambda i: (0, 0))]
    args = [x, w_ih, b_ih.reshape(1, G), w_hh, b_hh.reshape(1, G)]
    scratch = [pltpu.VMEM((b_pad, Hp), jnp.float32),        # carried hidden state
               pltpu.VMEM((rows_blk, G), jnp.float32)]      # block gi
    if fused:
        NCp = head_w.shape[1]
        in_specs += [pl.BlockSpec((Hp, NCp), lambda i: (0, 0)),
                     pl.BlockSpec((1, NCp), lambda i: (0, 0))]
        args += [head_w, head_b.reshape(1, NCp)]
        scratch += [pltpu.VMEM((rows_blk, Hp), jnp.float32)]  # h slab for head

    # TODO(synk): v7x megacore: add a leading batch-split "parallel" grid axis
    # (per-core h scratch) once batches are large enough to shard across TCs.
    return pl.pallas_call(
        kernel,
        out_shape=jax.ShapeDtypeStruct((MB, n_out), out_dtype),
        grid=(n_blocks,),
        in_specs=in_specs,
        out_specs=pl.BlockSpec((rows_blk, n_out), lambda i: (i, 0)),
        scratch_shapes=scratch,
        compiler_params=pltpu.CompilerParams(
            # Hidden state carried across time blocks in VMEM scratch: this
            # grid axis must stay sequential -- never "parallel".
            dimension_semantics=("arbitrary",),
            vmem_limit_bytes=vmem_limit),
    )(*args)


# ------------------------------ CRNN forward -------------------------------

def crnn_forward(kp, spec, *, gru_time_block=None):
    """spec: (B, T, n_mels) float32 -> logits (B, T', num_classes)."""
    B, T, M = spec.shape
    kh, sh = kp["conv_kh"], kp["conv_sh"]
    To = (T - kh) // sh + 1
    Hp = kp["hid_pad"]
    NCp = kp["nc_pad"]
    NC = kp["num_classes"]
    L = kp["gru_layers"]
    mm_dtype = kp["mm_dtype"]
    mm_bytes = jnp.dtype(mm_dtype).itemsize
    vmem_limit = _vmem_limit_bytes()

    # Batch padded to one full sublane tile (8 rows f32 / 16 rows bf16): every
    # per-step slice in the recurrence is aligned and unmasked, and the
    # per-step h @ W_hh matmul feeds >= 8 MXU rows.
    b_tile = 16 if mm_bytes < 4 else 8
    Bp = _round_up(B, b_tile)
    if Bp != B:
        spec = jnp.pad(spec, ((0, Bp - B), (0, 0), (0, 0)))

    # --- Conv2d(1->C) as a single lane-dense im2col matmul (folded weight).
    # Time-major rows (t*Bp + b); columns i*n_mels + mel_index.
    pt = jnp.stack([spec[:, i:i + sh * To:sh, :] for i in range(kh)], axis=2)
    pt = pt.transpose(1, 0, 2, 3).reshape(To * Bp, kh * M)
    conv_tile_m = 2048 if vmem_limit >= 48 * 1024 * 1024 else 1024
    feats = pallas_matmul_bias(pt, kp["conv_w_fold"], kp["conv_b_fold"],
                               tile_m=conv_tile_m, out_dtype=mm_dtype,
                               vmem_limit=vmem_limit)            # (To*Bp, Dp)

    # --- Time blocking with bounded padding (Tp - To < n_blocks).
    if gru_time_block is None:
        gru_time_block = 512 if vmem_limit >= 48 * 1024 * 1024 else 256
    d_in0 = feats.shape[1]
    t_req = max(1, min(gru_time_block, To))
    t_req = _clamp_time_block(t_req, b_pad=Bp, d_in=max(d_in0, Hp), hp=Hp,
                              n_out=max(Hp, NCp), mm_bytes=mm_bytes,
                              vmem_limit=vmem_limit)
    n_blocks = pl.cdiv(To, t_req)
    t_blk = pl.cdiv(To, n_blocks)
    Tp = t_blk * n_blocks
    if Tp != To:
        feats = jnp.pad(feats, ((0, (Tp - To) * Bp), (0, 0)))

    # --- GRU stack: input projection + recurrence fused per time block; the
    # linear head is fused into the last layer (logits computed while the h
    # slab is still in VMEM).
    # TODO(synk): inter-layer GRU dropout is train-mode only; eval semantics.
    x = feats
    for l in range(L):
        last = l == L - 1
        x = pallas_gru_layer(
            x,
            kp[f"w_ih_pad_{l}"], kp[f"b_ih_pad_{l}"],
            kp[f"w_hh_pad_{l}"], kp[f"b_hh_pad_{l}"],
            t_blk=t_blk, b_pad=Bp,
            head_w=kp["head_w_pad"] if last else None,
            head_b=kp["head_b_pad"] if last else None,
            out_dtype=jnp.float32 if last else mm_dtype,
            vmem_limit=vmem_limit)

    # Tiny logits tensor: drop time/batch/lane padding, back to batch-first.
    logits = x.reshape(Tp, Bp, NCp)
    return logits[:To, :B, :NC].transpose(1, 0, 2)               # (B, To, NC)


# --------------------------- parameter preparation -------------------------

def prepare_params(p, mm_dtype=jnp.bfloat16):
    """Fold/pad raw PyTorch-layout params into the lane-aligned kernel layout.

    mm_dtype is the MXU operand dtype (weights stored in it, activations cast
    in-kernel); accumulation and gate math stay f32.  Biases stay f32.
    """
    kh, kw = p["conv_kh"], p["conv_kw"]
    sh, sw = p["conv_sh"], p["conv_sw"]
    C, H, NC = p["conv_c"], p["gru_hidden"], p["num_classes"]
    M = p["n_mels"]
    L = p["gru_layers"]
    Fo = (M - kw) // sw + 1
    CFo = C * Fo
    Dp = _round_up(CFo, 128)       # padded conv feature dim
    Hp = _round_up(H, 128)         # padded hidden dim (per gate)
    NCp = _round_up(NC, 128)       # padded head output dim

    # Folded conv weight (kh*n_mels, Dp): output column c*Fo+fo takes
    # conv_w[c,0,i,j] at patch row i*n_mels + (fo*sw + j).  Padding stays zero.
    conv_w = p["conv_w"].astype(jnp.float32)
    rows = (jnp.arange(kh)[:, None, None] * M
            + jnp.arange(Fo)[None, :, None] * sw
            + jnp.arange(kw)[None, None, :])                          # (kh,Fo,kw)
    cols = jnp.arange(C)[:, None] * Fo + jnp.arange(Fo)[None, :]      # (C,Fo)
    rr = jnp.broadcast_to(rows[None], (C, kh, Fo, kw)).reshape(-1)
    cc = jnp.broadcast_to(cols[:, None, :, None], (C, kh, Fo, kw)).reshape(-1)
    vv = jnp.broadcast_to(conv_w[:, 0, :, None, :], (C, kh, Fo, kw)).reshape(-1)
    conv_w_fold = jnp.zeros((kh * M, Dp), jnp.float32).at[rr, cc].set(vv)
    conv_b_fold = jnp.zeros((Dp,), jnp.float32).at[:CFo].set(
        jnp.repeat(p["conv_b"].astype(jnp.float32), Fo))

    def pad_gates(w_t, b, d_in, d_in_pad):
        # w_t: (d_in, 3H) gates [r|z|n] -> (d_in_pad, 3*Hp), zero-padded.
        wp = jnp.zeros((d_in_pad, 3 * Hp), jnp.float32)
        bp = jnp.zeros((3 * Hp,), jnp.float32)
        for g in range(3):
            wp = wp.at[:d_in, g * Hp:g * Hp + H].set(w_t[:, g * H:(g + 1) * H])
            bp = bp.at[g * Hp:g * Hp + H].set(b[g * H:(g + 1) * H])
        return wp.astype(mm_dtype), bp

    kp = {"conv_kh": kh, "conv_sh": sh, "gru_layers": L,
          "hid_pad": Hp, "nc_pad": NCp, "num_classes": NC,
          "mm_dtype": mm_dtype,
          "conv_w_fold": conv_w_fold.astype(mm_dtype),
          "conv_b_fold": conv_b_fold}
    for l in range(L):
        d_in = CFo if l == 0 else H
        d_in_pad = Dp if l == 0 else Hp
        w_ih, b_ih = pad_gates(p[f"w_ih_{l}"].T.astype(jnp.float32),
                               p[f"b_ih_{l}"], d_in, d_in_pad)
        w_hh, b_hh = pad_gates(p[f"w_hh_{l}"].T.astype(jnp.float32),
                               p[f"b_hh_{l}"], H, Hp)
        kp[f"w_ih_pad_{l}"] = w_ih
        kp[f"b_ih_pad_{l}"] = b_ih
        kp[f"w_hh_pad_{l}"] = w_hh
        kp[f"b_hh_pad_{l}"] = b_hh

    # Linear head, padded to 128 output lanes; padded rows/cols are zero.
    kp["head_w_pad"] = jnp.zeros((Hp, NCp), jnp.float32).at[:H, :NC].set(
        p["head_w"].T).astype(mm_dtype)
    kp["head_b_pad"] = jnp.zeros((NCp,), jnp.float32).at[:NC].set(p["head_b"])
    return kp


# --------------------------- pure-JAX reference ----------------------------

def ref_forward(p, spec):
    B, T, M = spec.shape
    sh, sw = p["conv_sh"], p["conv_sw"]
    H = p["gru_hidden"]

    x = spec[:, None, :, :]                                    # NCHW, C=1
    conv = lax.conv_general_dilated(
        x, p["conv_w"], window_strides=(sh, sw), padding="VALID",
        dimension_numbers=("NCHW", "OIHW", "NCHW"))
    conv = conv + p["conv_b"][None, :, None, None]
    conv = jnp.transpose(conv, (0, 2, 1, 3))                   # (B, To, C, Fo)
    feats = conv.reshape(B, conv.shape[1], -1)

    h = feats
    for l in range(p["gru_layers"]):
        w_ih = p[f"w_ih_{l}"]
        w_hh = p[f"w_hh_{l}"]
        b_ih = p[f"b_ih_{l}"]
        b_hh = p[f"b_hh_{l}"]

        def step(carry, x_t, w_ih=w_ih, w_hh=w_hh, b_ih=b_ih, b_hh=b_hh):
            gi = x_t @ w_ih.T + b_ih
            gh = carry @ w_hh.T + b_hh
            r = jax.nn.sigmoid(gi[:, :H] + gh[:, :H])
            z = jax.nn.sigmoid(gi[:, H:2 * H] + gh[:, H:2 * H])
            n = jnp.tanh(gi[:, 2 * H:] + r * gh[:, 2 * H:])
            h_new = (1.0 - z) * n + z * carry
            return h_new, h_new

        h0 = jnp.zeros((B, H), jnp.float32)
        _, ys = lax.scan(step, h0, jnp.transpose(h, (1, 0, 2)))
        h = jnp.transpose(ys, (1, 0, 2))

    return h @ p["head_w"].T + p["head_b"]


# ------------------------------- param init --------------------------------

def init_params(key, *, n_mels, conv_out_c, conv_kernel_size, conv_stride,
                gru_num_features, gru_num_layers, num_classes):
    kh, kw = conv_kernel_size
    sh, sw = conv_stride
    conv_out_freq = (n_mels - kw) // sw + 1
    gru_in0 = conv_out_c * conv_out_freq
    H = gru_num_features

    keys = jax.random.split(key, 4 + 4 * gru_num_layers)
    p = {
        "n_mels": n_mels,
        "conv_kh": kh, "conv_kw": kw, "conv_sh": sh, "conv_sw": sw,
        "conv_c": conv_out_c, "gru_layers": gru_num_layers,
        "gru_hidden": H, "num_classes": num_classes,
        # Conv2d weight in PyTorch OIHW layout (C, 1, kh, kw)
        "conv_w": 0.1 * jax.random.normal(keys[0], (conv_out_c, 1, kh, kw), jnp.float32),
        "conv_b": 0.1 * jax.random.normal(keys[1], (conv_out_c,), jnp.float32),
        # Linear head: PyTorch layout (num_classes, H)
        "head_w": 0.1 * jax.random.normal(keys[2], (num_classes, H), jnp.float32),
        "head_b": 0.1 * jax.random.normal(keys[3], (num_classes,), jnp.float32),
    }
    for l in range(gru_num_layers):
        d = gru_in0 if l == 0 else H
        k0, k1, k2, k3 = keys[4 + 4 * l: 8 + 4 * l]
        # PyTorch GRU layouts: weight_ih_l{k}: (3H, D), weight_hh_l{k}: (3H, H)
        p[f"w_ih_{l}"] = 0.1 * jax.random.normal(k0, (3 * H, d), jnp.float32)
        p[f"w_hh_{l}"] = 0.1 * jax.random.normal(k1, (3 * H, H), jnp.float32)
        p[f"b_ih_{l}"] = 0.1 * jax.random.normal(k2, (3 * H,), jnp.float32)
        p[f"b_hh_{l}"] = 0.1 * jax.random.normal(k3, (3 * H,), jnp.float32)
    return p


# ---------------------------------- main -----------------------------------

if __name__ == "__main__":
    key = jax.random.PRNGKey(0)
    k_param, k_in1, k_in2 = jax.random.split(key, 3)

    # Small synthetic CRNN config.
    n_mels = 16
    conv_out_c = 4
    conv_kernel_size = (3, 3)
    conv_stride = (2, 2)
    gru_num_features = 32
    gru_num_layers = 2
    num_classes = 5

    raw_params = init_params(
        k_param, n_mels=n_mels, conv_out_c=conv_out_c,
        conv_kernel_size=conv_kernel_size, conv_stride=conv_stride,
        gru_num_features=gru_num_features, gru_num_layers=gru_num_layers,
        num_classes=num_classes)

    # ---- Test 1: f32 MXU path, tight tolerance; 2 time blocks so the VMEM
    # hidden-state carry across grid steps and the fully-unrolled inner loop
    # are both exercised.
    spec1 = jax.random.normal(k_in1, (2, 17, n_mels), jnp.float32)
    kp_f32 = prepare_params(raw_params, mm_dtype=jnp.float32)
    out1 = jax.block_until_ready(crnn_forward(kp_f32, spec1, gru_time_block=4))
    ref1 = jax.block_until_ready(ref_forward(raw_params, spec1))
    assert out1.shape == ref1.shape, (out1.shape, ref1.shape)
    err1 = float(jnp.max(jnp.abs(out1 - ref1)))
    assert jnp.allclose(out1, ref1, atol=1e-4, rtol=1e-4), err1

    # ---- Test 2: bf16 MXU path (production default), relaxed tolerance;
    # longer sequence / odd batch exercises batch padding (Bp=16), time-block
    # padding and the lax.fori_loop(unroll=2) inner-loop path.
    spec2 = jax.random.normal(k_in2, (3, 69, n_mels), jnp.float32)
    kp_bf16 = prepare_params(raw_params, mm_dtype=jnp.bfloat16)
    out2 = jax.block_until_ready(crnn_forward(kp_bf16, spec2, gru_time_block=16))
    ref2 = jax.block_until_ready(ref_forward(raw_params, spec2))
    assert out2.shape == ref2.shape, (out2.shape, ref2.shape)
    err2 = float(jnp.max(jnp.abs(out2 - ref2)))
    assert jnp.allclose(out2, ref2, atol=8e-2, rtol=8e-2), err2

    print("KERNEL_OK")
</pallas_src>

<mosaic_0001>
module attributes {stable_mosaic.version = 11 : i64} {
  func.func @_matmul_bias_kernel(%arg0: i32, %arg1: memref<64x48xf32, #tpu.memory_space<vmem>>, %arg2: memref<48x128xf32, #tpu.memory_space<vmem>>, %arg3: memref<1x128xf32, #tpu.memory_space<vmem>>, %arg4: memref<64x128xf32, #tpu.memory_space<vmem>>) attributes {dimension_semantics = [#tpu.dimension_semantics<parallel>], iteration_bounds = array<i64: 1>, scalar_prefetch = 0 : i64, scratch_operands = 0 : i64, tpu.core_type = #tpu.core_type<tc>, window_params = [{transform_indices = @transform_0, window_bounds = array<i64: 64, 48>}, {pipeline_mode = #tpu.pipeline_mode<synchronous>, transform_indices = @transform_1, window_bounds = array<i64: 48, 128>}, {pipeline_mode = #tpu.pipeline_mode<synchronous>, transform_indices = @transform_2, window_bounds = array<i64: 1, 128>}, {transform_indices = @transform_3, window_bounds = array<i64: 64, 128>}]} {
    %c0 = arith.constant 0 : index
    %c0_0 = arith.constant 0 : index
    %0 = vector.load %arg1[%c0, %c0_0] : memref<64x48xf32, #tpu.memory_space<vmem>>, vector<64x48xf32>
    %c0_1 = arith.constant 0 : index
    %c0_2 = arith.constant 0 : index
    %1 = vector.load %arg2[%c0_1, %c0_2] : memref<48x128xf32, #tpu.memory_space<vmem>>, vector<48x128xf32>
    %cst = arith.constant dense<0.000000e+00> : vector<64x128xf32>
    %2 = tpu.matmul %0, %1, %cst {dimension_numbers = #tpu.dot_dimension_numbers<[1], [0], [0], [1], [0, 0, 1, 1], [], []>} : vector<64x48xf32>, vector<48x128xf32>, vector<64x128xf32> -> vector<64x128xf32>
    %c0_3 = arith.constant 0 : index
    %c0_4 = arith.constant 0 : index
    %3 = vector.load %arg3[%c0_3, %c0_4] : memref<1x128xf32, #tpu.memory_space<vmem>>, vector<1x128xf32>
    %4 = vector.broadcast %3 : vector<1x128xf32> to vector<64x128xf32>
    %5 = arith.addf %2, %4 : vector<64x128xf32>
    %c0_5 = arith.constant 0 : index
    %c0_6 = arith.constant 0 : index
    %6 = vector.load %arg4[%c0_5, %c0_6] : memref<64x128xf32, #tpu.memory_space<vmem>>, vector<64x128xf32>
    tpu.vector_store %arg4[%c0_5, %c0_6], %5 {strides = array<i32>} : memref<64x128xf32, #tpu.memory_space<vmem>>, vector<64x128xf32>,
    return
  }
  func.func @transform_0(%arg0: i32) -> (i32, i32) {
    %c0_i32 = arith.constant 0 : i32
    %c0_i32_0 = arith.constant 0 : i32
    return %arg0, %c0_i32 : i32, i32
  }
  func.func @transform_1(%arg0: i32) -> (i32, i32) {
    %c0_i32 = arith.constant 0 : i32
    %c0_i32_0 = arith.constant 0 : i32
    %c0_i32_1 = arith.constant 0 : i32
    return %c0_i32, %c0_i32_0 : i32, i32
  }
  func.func @transform_2(%arg0: i32) -> (i32, i32) {
    %c0_i32 = arith.constant 0 : i32
    %c0_i32_0 = arith.constant 0 : i32
    %c0_i32_1 = arith.constant 0 : i32
    return %c0_i32, %c0_i32_0 : i32, i32
  }
  func.func @transform_3(%arg0: i32) -> (i32, i32) {
    %c0_i32 = arith.constant 0 : i32
    %c0_i32_0 = arith.constant 0 : i32
    return %arg0, %c0_i32 : i32, i32
  }
}

</mosaic_0001>

<llo_original>
// kernel: tpu_custom_call.1
$region0: #{tpu_custom_call.1}
  #allocation0 [shape = 'u32[]', space=smem, size = 0x4, offset = 0x4, fixed_abs, tag = 'smem constant byte address 0x4 - core index']
  #allocation1 [shape = 'u32[144,128]{1,0:T(1,128)}', space=vmem, size = 0x12000, scoped, tag = 'internal scratch']
  %s0 = inlined_call_operand.vmem [shape: f32[64,48], index: 0, kind: input, shape index: {}]
  %s1 = inlined_call_operand.vmem [shape: f32[48,128], index: 1, kind: input, shape index: {}]
  %s2 = inlined_call_operand.vmem [shape: f32[1,128], index: 2, kind: input, shape index: {}]
  %s3 = inlined_call_operand.hbm [shape: f32[64,128], index: 3, kind: output, shape index: {}]
  %s4 = sld [smem:[#allocation0]]
  $region22: #{tpu_custom_call.1} parent=0
    _
  %s6 = ssub.s32 1, %s4
  %s7 = scalar_select 0, %s6, %s4
  $region1: #{tpu_custom_call.1} parent=0
    #allocation2 [shape = 'u8[32768]{0}', space=vmem, size = 0x8000, scoped, tag = 'output window, operand 0, single buffered']
    #allocation3 [shape = 's32[1]{0}', space=sflag, size = 0x4, scoped, tag = 'scoped memory for tpu_custom_call.1']
    %8 = vsyncpa [#allocation3], 0
    // Predicated region
    $region2: #{tpu_custom_call.1} parent=1 // pred_check
      _
    $region3: #{tpu_custom_call.1} parent=1 // pred_check_branch
      %10 = sbr.rel (0) target = $region5
    $region4: #{tpu_custom_call.1} parent=1 // pred_region
      _
    $region5: #{tpu_custom_call.1} parent=1 // pred_fallthru
      _
    // Predicated region
    $region6: #{tpu_custom_call.1} parent=1 // pred_check
      _
    $region7: #{tpu_custom_call.1} parent=1 // pred_check_branch
      %12 = sbr.rel (0) target = $region9
    $region8: #{tpu_custom_call.1} parent=1 // pred_region
      _
    $region9: #{tpu_custom_call.1} parent=1 // pred_fallthru
      _
    // Predicated region
    $region10: #{tpu_custom_call.1} parent=1 // pred_check
      _
    $region11: #{tpu_custom_call.1} parent=1 // pred_check_branch
      %14 = sbr.rel (0) target = $region13
    $region12: #{tpu_custom_call.1} parent=1 // pred_region
      _
    $region13: #{tpu_custom_call.1} parent=1 // pred_fallthru
      _
    %v15 = vld [vmem:[%s0] sm:$0xff]
    %v16 = vld [vmem:[%s0 + $0x8] sm:$0xff]
    %v17 = vld [vmem:[%s0 + $0x10] sm:$0xff]
    %v18 = vld [vmem:[%s0 + $0x18] sm:$0xff]
    %v19 = vld [vmem:[%s0 + $0x20] sm:$0xff]
    %v20 = vld [vmem:[%s0 + $0x28] sm:$0xff]
    %v21 = vld [vmem:[%s0 + $0x30] sm:$0xff]
    %v22 = vld [vmem:[%s0 + $0x38] sm:$0xff]
    %v23 = vld [vmem:[%s1] sm:$0xff]
    %v24 = vld [vmem:[%s1 + $0x8] sm:$0xff]
    %v25 = vld [vmem:[%s1 + $0x10] sm:$0xff]
    %v26 = vld [vmem:[%s1 + $0x18] sm:$0xff]
    %v27 = vld [vmem:[%s1 + $0x20] sm:$0xff]
    %v28 = vld [vmem:[%s1 + $0x28] sm:$0xff]
    %v29 = vld [vmem:[%s2] sm:$0x1]
    %v31 = vlaneseq
    %v32 = vshrl.u32 %v31, 7
    %v33 = vsub.s32 0, %v32
    %v34 = vrot.slane %v29, %v33
    %vm36 = vcmask 392192
    %v38 = vsel %vm36, %v15, 0
    %v41 = vsel %vm36, %v16, 0
    %v44 = vsel %vm36, %v17, 0
    %v47 = vsel %vm36, %v18, 0
    %v50 = vsel %vm36, %v19, 0
    %v53 = vsel %vm36, %v20, 0
    %v56 = vsel %vm36, %v21, 0
    %v59 = vsel %vm36, %v22, 0
    %61 = vmatprep.subr.mxu0 0.0
    %62 = vmatpush1.msra.mxu0 0.0
    %63 = vmatprep.subr.mxu0 0.0
    %64 = vmatpush1.msra.mxu0 0.0
    %65 = vmatprep.subr.mxu0 0.0
    %66 = vmatpush1.msra.mxu0 0.0
    %67 = vmatprep.subr.mxu0 0.0
    %68 = vmatpush1.msra.mxu0 0.0
    %69 = vmatprep.subr.mxu0 0.0
    %70 = vmatpush1.msra.mxu0 0.0
    %71 = vmatprep.subr.mxu0 0.0
    %72 = vmatpush1.msra.mxu0 0.0
    %73 = vmatprep.subr.mxu0 0.0
    %74 = vmatpush1.msra.mxu0 0.0
    %75 = vmatprep.subr.mxu0 0.0
    %76 = vmatpush1.msra.mxu0 0.0
    %77 = vmatprep.subr.mxu0 0.0
    %78 = vmatpush1.msra.mxu0 0.0
    %79 = vmatprep.subr.mxu0 0.0
    %80 = vmatpush1.msra.mxu0 0.0
    %81 = vmatprep.subr.mxu0 0.0
    %82 = vmatpush1.msra.mxu0 %v28
    %83 = vmatprep.subr.mxu0 0.0
    %84 = vmatpush1.msra.mxu0 %v27
    %85 = vmatprep.subr.mxu0 0.0
    %86 = vmatpush1.msra.mxu0 %v26
    %87 = vmatprep.subr.mxu0 0.0
    %88 = vmatpush1.msra.mxu0 %v25
    %89 = vmatprep.subr.mxu0 0.0
    %90 = vmatpush1.msra.mxu0 %v24
    %91 = vmatprep.subr.mxu0 0.0
    %92 = vmatpush1.msra.mxu0 %v23
    %93 = vmatprep.subr.mxu0 0.0
    %94 = vmatpush2.msra.mxu0 0.0
    %95 = vmatprep.subr.mxu0 0.0
    %96 = vmatpush2.msra.mxu0 0.0
    %97 = vmatprep.subr.mxu0 0.0
    %98 = vmatpush2.msra.mxu0 0.0
    %99 = vmatprep.subr.mxu0 0.0
    %100 = vmatpush2.msra.mxu0 0.0
    %101 = vmatprep.subr.mxu0 0.0
    %102 = vmatpush2.msra.mxu0 0.0
    %103 = vmatprep.subr.mxu0 0.0
    %104 = vmatpush2.msra.mxu0 0.0
    %105 = vmatprep.subr.mxu0 0.0
    %106 = vmatpush2.msra.mxu0 0.0
    %107 = vmatprep.subr.mxu0 0.0
    %108 = vmatpush2.msra.mxu0 0.0
    %109 = vmatprep.subr.mxu0 0.0
    %110 = vmatpush2.msra.mxu0 0.0
    %111 = vmatprep.subr.mxu0 0.0
    %112 = vmatpush2.msra.mxu0 0.0
    %113 = vmatprep.subr.mxu0 0.0
    %114 = vmatpush2.msra.mxu0 0.0
    %115 = vmatprep.subr.mxu0 0.0
    %116 = vmatpush2.msra.mxu0 0.0
    %117 = vmatprep.subr.mxu0 0.0
    %118 = vmatpush2.msra.mxu0 0.0
    %119 = vmatprep.subr.mxu0 0.0
    %120 = vmatpush2.msra.mxu0 0.0
    %121 = vmatprep.subr.mxu0 0.0
    %122 = vmatpush2.msra.mxu0 0.0
    %123 = vmatprep.subr.mxu0 0.0
    %124 = vmatpush2.msra.mxu0 0.0
    %125 = vmatprep.mubr.f32.mxu0 0.0
    %126 = vmatmul.mubr.f32.gmra.mxu0 %v38
    %v127 = vpop.f32.mrf.mxu0
    %v128 = vadd.f32 %v34, %v127
    %v129 = vpop.f32.mrf.mxu0
    %130 = vmatprep.mubr.f32.mxu0 0.0
    %131 = vmatmul.mubr.f32.gmra.mxu0 %v41
    %v132 = vpop.f32.mrf.mxu0
    %v133 = vadd.f32 %v34, %v132
    %v134 = vpop.f32.mrf.mxu0
    %135 = vmatprep.mubr.f32.mxu0 0.0
    %136 = vmatmul.mubr.f32.gmra.mxu0 %v44
    %v137 = vpop.f32.mrf.mxu0
    %v138 = vadd.f32 %v34, %v137
    %v139 = vpop.f32.mrf.mxu0
    %140 = vmatprep.mubr.f32.mxu0 0.0
    %141 = vmatmul.mubr.f32.gmra.mxu0 %v47
    %v142 = vpop.f32.mrf.mxu0
    %v143 = vadd.f32 %v34, %v142
    %v144 = vpop.f32.mrf.mxu0
    %145 = vmatprep.mubr.f32.mxu0 0.0
    %146 = vmatmul.mubr.f32.gmra.mxu0 %v50
    %v147 = vpop.f32.mrf.mxu0
    %v148 = vadd.f32 %v34, %v147
    %v149 = vpop.f32.mrf.mxu0
    %150 = vmatprep.mubr.f32.mxu0 0.0
    %151 = vmatmul.mubr.f32.gmra.mxu0 %v53
    %v152 = vpop.f32.mrf.mxu0
    %v153 = vadd.f32 %v34, %v152
    %v154 = vpop.f32.mrf.mxu0
    %155 = vmatprep.mubr.f32.mxu0 0.0
    %156 = vmatmul.mubr.f32.gmra.mxu0 %v56
    %v157 = vpop.f32.mrf.mxu0
    %v158 = vadd.f32 %v34, %v157
    %v159 = vpop.f32.mrf.mxu0
    %160 = vmatprep.mubr.f32.mxu0 0.0
    %161 = vmatmul.mubr.f32.gmra.mxu0 %v59
    %v162 = vpop.f32.mrf.mxu0
    %v163 = vadd.f32 %v34, %v162
    %v164 = vpop.f32.mrf.mxu0
    %165 = vdwg.mxu0
    %166 = vst [vmem:[#allocation2] sm:$0xff] %v128
    %167 = vst [vmem:[#allocation2 + $0x8] sm:$0xff] %v133
    %168 = vst [vmem:[#allocation2 + $0x10] sm:$0xff] %v138
    %169 = vst [vmem:[#allocation2 + $0x18] sm:$0xff] %v143
    %170 = vst [vmem:[#allocation2 + $0x20] sm:$0xff] %v148
    %171 = vst [vmem:[#allocation2 + $0x28] sm:$0xff] %v153
    %172 = vst [vmem:[#allocation2 + $0x30] sm:$0xff] %v158
    %173 = vst [vmem:[#allocation2 + $0x38] sm:$0xff] %v163
    // Predicated region
    $region14: #{tpu_custom_call.1} parent=1 // pred_check
      _
    $region15: #{tpu_custom_call.1} parent=1 // pred_check_branch
      %175 = sbr.rel (0) target = $region17
    $region16: #{tpu_custom_call.1} parent=1 // pred_region
      %s177 = ssub.s32 1024, 1024
      %178 = vsyncadd [#allocation3], %s177
      %s179 = sshll.u32 [#allocation2], 4
      %s180 = int_to_ptr.vmem [resolvable:$true] %s179
      %185 = dma.vmem_to_hbm [thread:$0]  %s180, 1024, %s3, [#allocation3], 128, 128, 8
    $region17: #{tpu_custom_call.1} parent=1 // pred_fallthru
      _
    // Predicated region
    $region18: #{tpu_custom_call.1} parent=1 // pred_check
      _
    $region19: #{tpu_custom_call.1} parent=1 // pred_check_branch
      %187 = sbr.rel (0) target = $region21
    $region20: #{tpu_custom_call.1} parent=1 // pred_region
      %188 = dma.done [#allocation3], 1024
    $region21: #{tpu_custom_call.1} parent=1 // pred_fallthru
      _
    %189 = vsyncpa [#allocation3], 1

</llo_original>
